<compile_context>
chip_gen: v7x
topology: tpu7x:2x2x1
jax: 0.10.0
libtpu: 0.0.40
codegen_flags: <defaults>
</compile_context>

<pallas_src>
import functools
import math

import jax
import jax.numpy as jnp
from jax.experimental import pallas as pl
from jax.experimental.pallas import tpu as pltpu


# ----------------------------------------------------------------------------
# Fused kernel: one (batch, spatial-tile) block per grid step.
# ----------------------------------------------------------------------------
def _fcomb_kernel(*refs, num_extra_layers):
    """refs layout (inputs ... output):
        feat_ref : (1, C, THW) f32   decoder features, NCHW-native, flat spatial
        zb_ref   : (1, C, 1)   f32   per-batch (z @ Wz + b1) bias column
        w1_ref   : (C, C)      bf16  first 1x1 conv weight (feature-channel part)
        then `num_extra_layers` pairs of (w (C,C) bf16, b (C,1) f32)
        o_ref    : (1, C, THW) bf16
    """
    feat_ref, zb_ref, w1_ref = refs[0], refs[1], refs[2]
    o_ref = refs[-1]
    extra = refs[3:-1]

    # conv1x1(concat([feat, tile(z)])) == Wf @ feat + (Wz @ z): z is spatially
    # constant, so its contribution is the per-batch bias column zb (C, 1).
    x = feat_ref[0].astype(jnp.bfloat16)                              # (C, THW)
    h = jnp.dot(w1_ref[...], x, preferred_element_type=jnp.float32)   # (C, THW)
    h = jnp.maximum(h + zb_ref[0], 0.0)                               # ReLU

    # Remaining (C -> C) 1x1 convs + ReLU, statically unrolled; activations
    # never leave VMEM/vregs between layers.
    for i in range(num_extra_layers):
        w_ref, b_ref = extra[2 * i], extra[2 * i + 1]
        h = jnp.dot(w_ref[...], h.astype(jnp.bfloat16),
                    preferred_element_type=jnp.float32)
        h = jnp.maximum(h + b_ref[...], 0.0)

    o_ref[0] = h.astype(o_ref.dtype)


def _choose_spatial_tile(HW, B, max_lanes=2048):
    """Lane-dense spatial tile: bounded VMEM and >= 2 total grid steps (v7x)."""
    thw = HW
    if thw > max_lanes:
        # Largest multiple of 512 <= max_lanes that divides HW, if one exists.
        thw = max_lanes
        while thw >= 512 and HW % thw != 0:
            thw -= 512
        if thw < 512:
            thw = max_lanes  # ragged last block: padded reads / masked writes, still exact
    if B == 1 and thw == HW and HW % 256 == 0:
        thw = HW // 2        # give v7x's second TensorCore a step even at B=1
    return thw


# ----------------------------------------------------------------------------
# Wrapper: matches the PyTorch module contract (NCHW feat, (B, L) z).
# ----------------------------------------------------------------------------
def tile_concat_fcomb(feat_nchw, z, params, *, out_dtype=jnp.bfloat16):
    """feat_nchw: (B, C, H, W) f32; z: (B, L) f32.

    params:
      "w1"    : (C, C+L, 1, 1) torch-layout weight of the first 1x1 conv
      "b1"    : (C,)
      "extra" : list of (w (C, C, 1, 1), b (C,)) for the remaining conv layers
    Returns (B, C, H, W) in `out_dtype` (bf16 by default; cast outside if a
    consumer truly needs f32 — the values are bf16-precision either way).
    """
    B, C, H, W = feat_nchw.shape
    L = z.shape[1]
    HW = H * W

    # torch Conv2d weight (out, in, 1, 1); split the input-channel axis into the
    # feature slice and the latent slice. NCHW-native matmul uses W directly
    # (out x in) @ (in x HW) -> no transpose needed.
    w1 = params["w1"][:, :, 0, 0]                                     # (C, C+L)
    w1f = w1[:, :C].astype(jnp.bfloat16)                              # (C, C)
    w1z = w1[:, C:]                                                   # (C, L)

    # Per-batch z contribution + first-layer bias, computed once in XLA (tiny
    # (B,L)@(L,C)); shaped (B, C, 1) so it lane-broadcasts over HW in-kernel.
    zb = jnp.dot(z.astype(jnp.bfloat16),
                 jnp.transpose(w1z).astype(jnp.bfloat16),
                 preferred_element_type=jnp.float32) + params["b1"][None, :]
    zb = zb.reshape(B, C, 1).astype(jnp.float32)

    extra_inputs, extra_specs = [], []
    for (w, b) in params["extra"]:
        extra_inputs.append(w[:, :, 0, 0].astype(jnp.bfloat16))       # (C, C)
        extra_inputs.append(b.reshape(C, 1).astype(jnp.float32))      # (C, 1)
        extra_specs.append(pl.BlockSpec((C, C), lambda bi, si: (0, 0)))
        extra_specs.append(pl.BlockSpec((C, 1), lambda bi, si: (0, 0)))

    # Free, contiguous reshape — NO transpose, NO wrapper-side dtype cast.
    feat = feat_nchw.reshape(B, C, HW)

    thw = _choose_spatial_tile(HW, B)
    n_hw = pl.cdiv(HW, thw)

    kernel = functools.partial(_fcomb_kernel,
                               num_extra_layers=len(params["extra"]))

    out = pl.pallas_call(
        kernel,
        out_shape=jax.ShapeDtypeStruct((B, C, HW), out_dtype),
        grid=(B, n_hw),
        in_specs=[
            pl.BlockSpec((1, C, thw), lambda bi, si: (bi, 0, si)),    # feat
            pl.BlockSpec((1, C, 1), lambda bi, si: (bi, 0, 0)),       # zb
            pl.BlockSpec((C, C), lambda bi, si: (0, 0)),              # w1f
        ] + extra_specs,
        out_specs=pl.BlockSpec((1, C, thw), lambda bi, si: (bi, 0, si)),
        compiler_params=pltpu.CompilerParams(
            # batch and spatial tiles are independent -> megacore-shardable on
            # v7x; neutral on single-TC v5e/v6e.
            dimension_semantics=("parallel", "parallel")),
        # NOTE: weights/biases have constant index maps; if C grows, consider
        # pipeline_mode=pl.Buffered(1) on those specs and an explicit
        # vmem_limit_bytes for v7x's 64 MiB VMEM.
    )(feat, zb, w1f, *extra_inputs)

    return out.reshape(B, C, H, W)


# ----------------------------------------------------------------------------
# Literal reference (tile + concat + 1x1 convs), same bf16 matmul precision.
# ----------------------------------------------------------------------------
def reference(feat_nchw, z, params):
    B, C, H, W = feat_nchw.shape
    L = z.shape[1]
    z_tiled = jnp.broadcast_to(z[:, :, None, None], (B, L, H, W))
    x = jnp.concatenate([feat_nchw, z_tiled], axis=1)                 # (B, C+L, H, W)

    def conv1x1(x, w, b):
        y = jnp.einsum("bihw,oi->bohw",
                       x.astype(jnp.bfloat16),
                       w[:, :, 0, 0].astype(jnp.bfloat16),
                       preferred_element_type=jnp.float32)
        return y + b[None, :, None, None]

    y = jax.nn.relu(conv1x1(x, params["w1"], params["b1"]))
    for (w, b) in params["extra"]:
        y = jax.nn.relu(conv1x1(y, w, b))
    return y


# ----------------------------------------------------------------------------
# Main
# ----------------------------------------------------------------------------
if __name__ == "__main__":
    key = jax.random.PRNGKey(0)
    k1, k2, k3, k4, kf, kz = jax.random.split(key, 6)

    B, C, L, H, W = 2, 64, 32, 16, 16        # feature_channels=64, latent_dim=32
    # no_convs_fcomb = 3  ->  Conv(C+L, C)+ReLU, Conv(C, C)+ReLU
    w1 = jax.random.normal(k1, (C, C + L, 1, 1), jnp.float32) / math.sqrt(C + L)
    b1 = 0.01 * jax.random.normal(k2, (C,), jnp.float32)
    w2 = jax.random.normal(k3, (C, C, 1, 1), jnp.float32) / math.sqrt(C)
    b2 = 0.01 * jax.random.normal(k4, (C,), jnp.float32)
    params = {"w1": w1, "b1": b1, "extra": [(w2, b2)]}

    feat = jax.random.normal(kf, (B, C, H, W), jnp.float32)
    z = jax.random.normal(kz, (B, L), jnp.float32)

    out = tile_concat_fcomb(feat, z, params)
    jax.block_until_ready(out)
    assert out.shape == (B, C, H, W)

    # Compare against the literal reference, with the reference also rounded to
    # bf16 at the output so both sides carry the same output precision.
    ref = reference(feat, z, params)
    ref_b = ref.astype(jnp.bfloat16).astype(jnp.float32)
    max_err = float(jnp.max(jnp.abs(out.astype(jnp.float32) - ref_b)))
    assert max_err < 5e-2, f"mismatch vs reference: {max_err}"

    print("KERNEL_OK")
</pallas_src>

<mosaic_0001>
module attributes {stable_mosaic.version = 11 : i64} {
  func.func @_fcomb_kernel(%arg0: i32, %arg1: i32, %arg2: memref<1x64x256xf32, #tpu.memory_space<vmem>>, %arg3: memref<1x64x1xf32, #tpu.memory_space<vmem>>, %arg4: memref<64x64xbf16, #tpu.memory_space<vmem>>, %arg5: memref<64x64xbf16, #tpu.memory_space<vmem>>, %arg6: memref<64x1xf32, #tpu.memory_space<vmem>>, %arg7: memref<1x64x256xbf16, #tpu.memory_space<vmem>>) attributes {dimension_semantics = [#tpu.dimension_semantics<parallel>, #tpu.dimension_semantics<parallel>], iteration_bounds = array<i64: 2, 1>, scalar_prefetch = 0 : i64, scratch_operands = 0 : i64, tpu.core_type = #tpu.core_type<tc>, window_params = [{transform_indices = @transform_0, window_bounds = array<i64: 1, 64, 256>}, {transform_indices = @transform_1, window_bounds = array<i64: 1, 64, 1>}, {pipeline_mode = #tpu.pipeline_mode<synchronous>, transform_indices = @transform_2, window_bounds = array<i64: 64, 64>}, {pipeline_mode = #tpu.pipeline_mode<synchronous>, transform_indices = @transform_3, window_bounds = array<i64: 64, 64>}, {pipeline_mode = #tpu.pipeline_mode<synchronous>, transform_indices = @transform_4, window_bounds = array<i64: 64, 1>}, {transform_indices = @transform_5, window_bounds = array<i64: 1, 64, 256>}]} {
    %c0 = arith.constant 0 : index
    %c0_0 = arith.constant 0 : index
    %c0_1 = arith.constant 0 : index
    %0 = vector.load %arg2[%c0, %c0_0, %c0_1] : memref<1x64x256xf32, #tpu.memory_space<vmem>>, vector<1x64x256xf32>
    %1 = vector.shape_cast %0 : vector<1x64x256xf32> to vector<64x256xf32>
    %2 = arith.truncf %1 : vector<64x256xf32> to vector<64x256xbf16>
    %c0_2 = arith.constant 0 : index
    %c0_3 = arith.constant 0 : index
    %3 = vector.load %arg4[%c0_2, %c0_3] : memref<64x64xbf16, #tpu.memory_space<vmem>>, vector<64x64xbf16>
    %cst = arith.constant dense<0.000000e+00> : vector<64x256xf32>
    %4 = tpu.matmul %3, %2, %cst {dimension_numbers = #tpu.dot_dimension_numbers<[1], [0], [0], [1], [0, 0, 1, 1], [], []>} : vector<64x64xbf16>, vector<64x256xbf16>, vector<64x256xf32> -> vector<64x256xf32>
    %c0_4 = arith.constant 0 : index
    %c0_5 = arith.constant 0 : index
    %c0_6 = arith.constant 0 : index
    %5 = vector.load %arg3[%c0_4, %c0_5, %c0_6] : memref<1x64x1xf32, #tpu.memory_space<vmem>>, vector<1x64x1xf32>
    %6 = vector.shape_cast %5 : vector<1x64x1xf32> to vector<64x1xf32>
    %7 = vector.broadcast %6 : vector<64x1xf32> to vector<64x256xf32>
    %8 = arith.addf %4, %7 : vector<64x256xf32>
    %cst_7 = arith.constant 0.000000e+00 : f32
    %9 = vector.broadcast %cst_7 : f32 to vector<64x256xf32>
    %10 = arith.maximumf %8, %9 : vector<64x256xf32>
    %c0_8 = arith.constant 0 : index
    %c0_9 = arith.constant 0 : index
    %11 = vector.load %arg5[%c0_8, %c0_9] : memref<64x64xbf16, #tpu.memory_space<vmem>>, vector<64x64xbf16>
    %12 = arith.truncf %10 : vector<64x256xf32> to vector<64x256xbf16>
    %cst_10 = arith.constant dense<0.000000e+00> : vector<64x256xf32>
    %13 = tpu.matmul %11, %12, %cst_10 {dimension_numbers = #tpu.dot_dimension_numbers<[1], [0], [0], [1], [0, 0, 1, 1], [], []>} : vector<64x64xbf16>, vector<64x256xbf16>, vector<64x256xf32> -> vector<64x256xf32>
    %c0_11 = arith.constant 0 : index
    %c0_12 = arith.constant 0 : index
    %14 = vector.load %arg6[%c0_11, %c0_12] : memref<64x1xf32, #tpu.memory_space<vmem>>, vector<64x1xf32>
    %15 = vector.broadcast %14 : vector<64x1xf32> to vector<64x256xf32>
    %16 = arith.addf %13, %15 : vector<64x256xf32>
    %cst_13 = arith.constant 0.000000e+00 : f32
    %17 = vector.broadcast %cst_13 : f32 to vector<64x256xf32>
    %18 = arith.maximumf %16, %17 : vector<64x256xf32>
    %19 = arith.truncf %18 : vector<64x256xf32> to vector<64x256xbf16>
    %c0_14 = arith.constant 0 : index
    %c0_15 = arith.constant 0 : index
    %c0_16 = arith.constant 0 : index
    %20 = vector.load %arg7[%c0_14, %c0_15, %c0_16] : memref<1x64x256xbf16, #tpu.memory_space<vmem>>, vector<1x64x256xbf16>
    %21 = vector.shape_cast %20 : vector<1x64x256xbf16> to vector<64x256xbf16>
    %22 = vector.shape_cast %19 : vector<64x256xbf16> to vector<1x64x256xbf16>
    tpu.vector_store %arg7[%c0_14, %c0_15, %c0_16], %22 {strides = array<i32>} : memref<1x64x256xbf16, #tpu.memory_space<vmem>>, vector<1x64x256xbf16>,
    return
  }
  func.func @transform_0(%arg0: i32, %arg1: i32) -> (i32, i32, i32) {
    %c0_i32 = arith.constant 0 : i32
    %c0_i32_0 = arith.constant 0 : i32
    return %arg0, %c0_i32, %arg1 : i32, i32, i32
  }
  func.func @transform_1(%arg0: i32, %arg1: i32) -> (i32, i32, i32) {
    %c0_i32 = arith.constant 0 : i32
    %c0_i32_0 = arith.constant 0 : i32
    %c0_i32_1 = arith.constant 0 : i32
    return %arg0, %c0_i32, %c0_i32_0 : i32, i32, i32
  }
  func.func @transform_2(%arg0: i32, %arg1: i32) -> (i32, i32) {
    %c0_i32 = arith.constant 0 : i32
    %c0_i32_0 = arith.constant 0 : i32
    %c0_i32_1 = arith.constant 0 : i32
    return %c0_i32, %c0_i32_0 : i32, i32
  }
  func.func @transform_3(%arg0: i32, %arg1: i32) -> (i32, i32) {
    %c0_i32 = arith.constant 0 : i32
    %c0_i32_0 = arith.constant 0 : i32
    %c0_i32_1 = arith.constant 0 : i32
    return %c0_i32, %c0_i32_0 : i32, i32
  }
  func.func @transform_4(%arg0: i32, %arg1: i32) -> (i32, i32) {
    %c0_i32 = arith.constant 0 : i32
    %c0_i32_0 = arith.constant 0 : i32
    %c0_i32_1 = arith.constant 0 : i32
    return %c0_i32, %c0_i32_0 : i32, i32
  }
  func.func @transform_5(%arg0: i32, %arg1: i32) -> (i32, i32, i32) {
    %c0_i32 = arith.constant 0 : i32
    %c0_i32_0 = arith.constant 0 : i32
    return %arg0, %c0_i32, %arg1 : i32, i32, i32
  }
}

</mosaic_0001>

<llo_original>
// kernel: tpu_custom_call.1
$region0: #{tpu_custom_call.1}
  #allocation0 [shape = 'u32[]', space=smem, size = 0x4, offset = 0x4, fixed_abs, tag = 'smem constant byte address 0x4 - core index']
  #allocation1 [shape = 'u32[144,128]{1,0:T(1,128)}', space=vmem, size = 0x12000, scoped, tag = 'internal scratch']
  %s0 = inlined_call_operand.hbm [shape: f32[2,64,256], index: 0, kind: input, shape index: {}]
  %s1 = inlined_call_operand.vmem [shape: f32[2,64,1], index: 1, kind: input, shape index: {}]
  %s2 = inlined_call_operand.vmem [shape: bf16[64,64], index: 2, kind: input, shape index: {}]
  %s3 = inlined_call_operand.vmem [shape: bf16[64,64], index: 3, kind: input, shape index: {}]
  %s4 = inlined_call_operand.vmem [shape: f32[64,1], index: 4, kind: input, shape index: {}]
  %s5 = inlined_call_operand.hbm [shape: bf16[2,64,256], index: 5, kind: output, shape index: {}]
  %s6 = sld [smem:[#allocation0]]
  $region57: #{tpu_custom_call.1} parent=0
    _
  %s8 = ssub.s32 1, %s6
  %s9 = scalar_select 0, %s8, %s6
  $region1: #{tpu_custom_call.1} parent=0
    #allocation2 [shape = 'u8[131072]{0}', space=vmem, size = 0x20000, scoped, tag = 'input window, operand 0']
    #allocation3 [shape = 's32[2]{0}', space=sflag, size = 0x8, scoped, tag = 'scoped memory for tpu_custom_call.1']
    #allocation4 [shape = 's32[2]{0}', space=sflag, size = 0x8, scoped, tag = 'scoped memory for tpu_custom_call.1']
    #allocation5 [shape = 'u8[65536]{0}', space=vmem, size = 0x10000, scoped, tag = 'output window, operand 0']
    %10 = vsyncpa [#allocation3], 0
    %s11 = scalar_lea.sflag [#allocation3], 1
    %12 = vsyncpa %s11, 0
    %13 = vsyncpa [#allocation4], 0
    %s14 = scalar_lea.sflag [#allocation4], 1
    %15 = vsyncpa %s14, 0
    loop: start=0, step=1, limit=4
    $region2: #{tpu_custom_call.1} parent=1 // loop_pre_header
      _
    $region3: #{tpu_custom_call.1} parent=1 // loop_header
      %s17 = sphi 0, %s21
      %p18 = scmp.ge.s32.totalorder %s17, 4
      %s24 = sphi 0, %s36
      %s25 = sphi 0, %s32
      %s26 = sphi 0, %s24
      %s27 = sphi 0, %s25
      %s28 = sphi 0, %s26
      %s29 = sphi 0, %s27
      %s41 = sphi 0, %s43
      %s44 = sphi 0, %s41
      %s45 = sphi 0, %s44
      %s61 = sphi 0, %s45
      %s67 = sphi 0, %s69
      %s70 = sphi 0, %s67
      %s71 = sphi 0, %s70
      %s87 = sphi 0, %s71
      %s91 = sphi 0, %s91
      %s93 = sphi 0, %s91
      %s94 = sphi 0, %s93
      %s108 = sphi 0, %s94
      %s112 = sphi 0, %s112
      %s114 = sphi 0, %s112
      %s115 = sphi 0, %s114
      %s129 = sphi 0, %s115
      %s133 = sphi 0, %s133
      %s135 = sphi 0, %s133
      %s136 = sphi 0, %s135
      %s150 = sphi 0, %s136
      %s158 = sphi 0, %s160
      %s161 = sphi 0, %s158
      %s162 = sphi 0, %s161
      %s178 = sphi 0, %s162
    $region4: #{tpu_custom_call.1} parent=1 // loop_header_branch
      %20 = sbr.rel (%p18) target = $region8
    $region5: #{tpu_custom_call.1} parent=1 // loop_body
      %s22 = ssub.s32 %s17, 1
      %s23 = ssub.s32 %s17, 2
      %s30 = sadd.s32 1, %s25
      %p31 = scmp.ge.s32.totalorder %s30, 1
      %s32 = scalar_select %p31, 0, %s30
      %s33 = sadd.s32 1, %s24
      %s34 = scalar_select %p31, %s33, %s24
      %p35 = scmp.ge.s32.totalorder %s34, 2
      %s36 = scalar_select %p35, 0, %s34
      %s37 = ssub.s32 %s24, %s36
      %s38 = ssub.s32 %s25, %s32
      %s39 = sor.u32 %s37, %s38
      %p40 = scmp.eq.s32.totalorder %s39, 0
      %s42 = sadd.s32 %s41, 1
      %s43 = scalar_select %p40, %s41, %s42
      %p46 = pneg %p40
      %p47 = scmp.eq.s32.totalorder %s17, 1
      %p48 = por %p46, %p47
      %p49 = scmp.ne.s32.totalorder %s41, %s44
      %p50 = scmp.eq.s32.totalorder %s17, 0
      %p51 = por %p49, %p50
      %p52 = scmp.ne.s32.totalorder %s41, %s44
      %p53 = scmp.eq.s32.totalorder %s22, 1
      %p54 = por %p52, %p53
      %p55 = scmp.ne.s32.totalorder %s44, %s45
      %p56 = scmp.eq.s32.totalorder %s22, 0
      %p57 = por %p55, %p56
      %p58 = scmp.ne.s32.totalorder %s44, %s45
      %p59 = scmp.eq.s32.totalorder %s23, 1
      %p60 = por %p58, %p59
      %p62 = scmp.ne.s32.totalorder %s45, %s61
      %p63 = scmp.eq.s32.totalorder %s23, 0
      %p64 = por %p62, %p63
      %s65 = ssub.s32 %s24, %s36
      %p66 = scmp.eq.s32.totalorder %s65, 0
      %s68 = sadd.s32 %s67, 1
      %s69 = scalar_select %p66, %s67, %s68
      %p72 = pneg %p66
      %p73 = scmp.eq.s32.totalorder %s17, 1
      %p74 = por %p72, %p73
      %p75 = scmp.ne.s32.totalorder %s67, %s70
      %p76 = scmp.eq.s32.totalorder %s17, 0
      %p77 = por %p75, %p76
      %p78 = scmp.ne.s32.totalorder %s67, %s70
      %p79 = scmp.eq.s32.totalorder %s22, 1
      %p80 = por %p78, %p79
      %p81 = scmp.ne.s32.totalorder %s70, %s71
      %p82 = scmp.eq.s32.totalorder %s22, 0
      %p83 = por %p81, %p82
      %p84 = scmp.ne.s32.totalorder %s70, %s71
      %p85 = scmp.eq.s32.totalorder %s23, 1
      %p86 = por %p84, %p85
      %p88 = scmp.ne.s32.totalorder %s71, %s87
      %p89 = scmp.eq.s32.totalorder %s23, 0
      %p90 = por %p88, %p89
      %s92 = sadd.s32 %s91, 1
      %p95 = scmp.eq.s32.totalorder %s17, 1
      %p96 = scmp.ne.s32.totalorder %s91, %s93
      %p97 = scmp.eq.s32.totalorder %s17, 0
      %p98 = por %p96, %p97
      %p99 = scmp.ne.s32.totalorder %s91, %s93
      %p100 = scmp.eq.s32.totalorder %s22, 1
      %p101 = por %p99, %p100
      %p102 = scmp.ne.s32.totalorder %s93, %s94
      %p103 = scmp.eq.s32.totalorder %s22, 0
      %p104 = por %p102, %p103
      %p105 = scmp.ne.s32.totalorder %s93, %s94
      %p106 = scmp.eq.s32.totalorder %s23, 1
      %p107 = por %p105, %p106
      %p109 = scmp.ne.s32.totalorder %s94, %s108
      %p110 = scmp.eq.s32.totalorder %s23, 0
      %p111 = por %p109, %p110
      %s113 = sadd.s32 %s112, 1
      %p116 = scmp.eq.s32.totalorder %s17, 1
      %p117 = scmp.ne.s32.totalorder %s112, %s114
      %p118 = scmp.eq.s32.totalorder %s17, 0
      %p119 = por %p117, %p118
      %p120 = scmp.ne.s32.totalorder %s112, %s114
      %p121 = scmp.eq.s32.totalorder %s22, 1
      %p122 = por %p120, %p121
      %p123 = scmp.ne.s32.totalorder %s114, %s115
      %p124 = scmp.eq.s32.totalorder %s22, 0
      %p125 = por %p123, %p124
      %p126 = scmp.ne.s32.totalorder %s114, %s115
      %p127 = scmp.eq.s32.totalorder %s23, 1
      %p128 = por %p126, %p127
      %p130 = scmp.ne.s32.totalorder %s115, %s129
      %p131 = scmp.eq.s32.totalorder %s23, 0
      %p132 = por %p130, %p131
      %s134 = sadd.s32 %s133, 1
      %p137 = scmp.eq.s32.totalorder %s17, 1
      %p138 = scmp.ne.s32.totalorder %s133, %s135
      %p139 = scmp.eq.s32.totalorder %s17, 0
      %p140 = por %p138, %p139
      %p141 = scmp.ne.s32.totalorder %s133, %s135
      %p142 = scmp.eq.s32.totalorder %s22, 1
      %p143 = por %p141, %p142
      %p144 = scmp.ne.s32.totalorder %s135, %s136
      %p145 = scmp.eq.s32.totalorder %s22, 0
      %p146 = por %p144, %p145
      %p147 = scmp.ne.s32.totalorder %s135, %s136
      %p148 = scmp.eq.s32.totalorder %s23, 1
      %p149 = por %p147, %p148
      %p151 = scmp.ne.s32.totalorder %s136, %s150
      %p152 = scmp.eq.s32.totalorder %s23, 0
      %p153 = por %p151, %p152
      %s154 = ssub.s32 %s24, %s36
      %s155 = ssub.s32 %s25, %s32
      %s156 = sor.u32 %s154, %s155
      %p157 = scmp.eq.s32.totalorder %s156, 0
      %s159 = sadd.s32 %s158, 1
      %s160 = scalar_select %p157, %s158, %s159
      %p163 = pneg %p157
      %p164 = scmp.eq.s32.totalorder %s17, 1
      %p165 = por %p163, %p164
      %p166 = scmp.ne.s32.totalorder %s158, %s161
      %p167 = scmp.eq.s32.totalorder %s17, 0
      %p168 = por %p166, %p167
      %p169 = scmp.ne.s32.totalorder %s158, %s161
      %p170 = scmp.eq.s32.totalorder %s22, 1
      %p171 = por %p169, %p170
      %p172 = scmp.ne.s32.totalorder %s161, %s162
      %p173 = scmp.eq.s32.totalorder %s22, 0
      %p174 = por %p172, %p173
      %p175 = scmp.ne.s32.totalorder %s161, %s162
      %p176 = scmp.eq.s32.totalorder %s23, 1
      %p177 = por %p175, %p176
      %p179 = scmp.ne.s32.totalorder %s162, %s178
      %p180 = scmp.eq.s32.totalorder %s23, 0
      %p181 = por %p179, %p180
      %p182 = scmp.le.s32.totalorder 1, %s17
      %p183 = scmp.lt.s32.totalorder %s17, 3
      %p184 = pnand %p182, %p183
      %p185 = pneg %p184
      // Predicated region
      $region9: #{tpu_custom_call.1} parent=5 // pred_check
        _
      $region10: #{tpu_custom_call.1} parent=5 // pred_check_branch
        %187 = sbr.rel (%p184) target = $region12
      $region11: #{tpu_custom_call.1} parent=5 // pred_region
        %s188 = ssub.s32 %s17, 1
        // Predicated region
        $region13: #{tpu_custom_call.1} parent=11 // pred_check
          %p189 = pneg %p104
        $region14: #{tpu_custom_call.1} parent=11 // pred_check_branch
          %191 = sbr.rel (%p189) target = $region16
        $region15: #{tpu_custom_call.1} parent=11 // pred_region
          _
        $region16: #{tpu_custom_call.1} parent=11 // pred_fallthru
          _
        // Predicated region
        $region17: #{tpu_custom_call.1} parent=11 // pred_check
          %p192 = pneg %p125
        $region18: #{tpu_custom_call.1} parent=11 // pred_check_branch
          %194 = sbr.rel (%p192) target = $region20
        $region19: #{tpu_custom_call.1} parent=11 // pred_region
          _
        $region20: #{tpu_custom_call.1} parent=11 // pred_fallthru
          _
        // Predicated region
        $region21: #{tpu_custom_call.1} parent=11 // pred_check
          %p195 = pneg %p146
        $region22: #{tpu_custom_call.1} parent=11 // pred_check_branch
          %197 = sbr.rel (%p195) target = $region24
        $region23: #{tpu_custom_call.1} parent=11 // pred_region
          _
        $region24: #{tpu_custom_call.1} parent=11 // pred_fallthru
          _
      $region12: #{tpu_custom_call.1} parent=5 // pred_fallthru
        _
      %p198 = scmp.lt.s32.totalorder %s17, 2
      // Predicated region
      $region25: #{tpu_custom_call.1} parent=5 // pred_check
        %p199 = pneg %p198
      $region26: #{tpu_custom_call.1} parent=5 // pred_check_branch
        %201 = sbr.rel (%p199) target = $region28
      $region27: #{tpu_custom_call.1} parent=5 // pred_region
        // Predicated region
        $region29: #{tpu_custom_call.1} parent=27 // pred_check
          %p202 = pneg %p51
        $region30: #{tpu_custom_call.1} parent=27 // pred_check_branch
          %204 = sbr.rel (%p202) target = $region32
        $region31: #{tpu_custom_call.1} parent=27 // pred_region
          %s205 = sand.u32 %s41, 1
          %s206 = scalar_lea.sflag [#allocation3], %s205
          %s207 = sand.u32 %s41, 1
          %s208 = smul.addr %s207, 128
          %s209 = scalar_lea.vmem [#allocation2], %s208
          %s210 = smul.u32 2, %s25
          %s212 = ssub.s32 2048, 2048
          %213 = vsyncadd %s206, %s212
          %s214 = smul.addr %s24, 16
          %s215 = sadd.s32 %s210, %s214
          %s216 = smul.addr %s215, 128
          %s217 = scalar_lea.hbm %s0, %s216
          %s218 = sshll.u32 %s209, 4
          %s219 = int_to_ptr.vmem [resolvable:$true] %s218
          %224 = dma.hbm_to_vmem [thread:$0]  %s217, 2048, %s219, %s206, 256, 256, 16
        $region32: #{tpu_custom_call.1} parent=27 // pred_fallthru
          _
        // Predicated region
        $region33: #{tpu_custom_call.1} parent=27 // pred_check
          %p225 = pneg %p77
        $region34: #{tpu_custom_call.1} parent=27 // pred_check_branch
          %227 = sbr.rel (%p225) target = $region36
        $region35: #{tpu_custom_call.1} parent=27 // pred_region
          %p228 = scmp.lt.s32.totalorder %s24, 1
          %s229 = scalar_select %p228, %s24, 1
          %s230 = smul.addr %s229, 8
          %s231 = smul.addr %s230, 8
          %s232 = scalar_lea.vmem %s1, %s231
        $region36: #{tpu_custom_call.1} parent=27 // pred_fallthru
          _
      $region28: #{tpu_custom_call.1} parent=5 // pred_fallthru
        _
      %p233 = scmp.le.s32.totalorder 1, %s17
      %p234 = scmp.lt.s32.totalorder %s17, 3
      %p235 = pnand %p233, %p234
      %p236 = pneg %p235
      // Predicated region
      $region37: #{tpu_custom_call.1} parent=5 // pred_check
        _
      $region38: #{tpu_custom_call.1} parent=5 // pred_check_branch
        %238 = sbr.rel (%p235) target = $region40
      $region39: #{tpu_custom_call.1} parent=5 // pred_region
        %s239 = ssub.s32 %s17, 1
        %s240 = sand.u32 %s44, 1
        %s241 = scalar_lea.sflag [#allocation3], %s240
        %s242 = sand.u32 %s44, 1
        %s243 = smul.addr %s242, 128
        %s244 = scalar_lea.vmem [#allocation2], %s243
        // Predicated region
        $region41: #{tpu_custom_call.1} parent=39 // pred_check
          %p245 = pneg %p57
        $region42: #{tpu_custom_call.1} parent=39 // pred_check_branch
          %247 = sbr.rel (%p245) target = $region44
        $region43: #{tpu_custom_call.1} parent=39 // pred_region
          %248 = dma.done %s241, 2048
        $region44: #{tpu_custom_call.1} parent=39 // pred_fallthru
          _
        %s249 = sand.u32 %s44, 1
        %s250 = scalar_lea.sflag [#allocation3], %s249
        %s251 = sand.u32 %s44, 1
        %s252 = smul.addr %s251, 128
        %s253 = scalar_lea.vmem [#allocation2], %s252
        %p254 = pneg %p57
        %p255 = pneg %p54
        %p256 = scmp.lt.s32.totalorder %s26, 1
        %s257 = scalar_select %p256, %s26, 1
        %s258 = smul.addr %s257, 8
        %s259 = smul.addr %s258, 8
        %s260 = scalar_lea.vmem %s1, %s259
        %p261 = pneg %p83
        %p262 = pneg %p80
        %p263 = pneg %p104
        %p264 = pneg %p101
        %p265 = pneg %p125
        %p266 = pneg %p122
        %p267 = pneg %p146
        %p268 = pneg %p143
        %p269 = pneg %p174
        %p270 = pneg %p171
        %s271 = sand.u32 %s161, 1
        %s272 = scalar_lea.sflag [#allocation4], %s271
        %s273 = sand.u32 %s161, 1
        %s274 = smul.addr %s273, 64
        %s275 = scalar_lea.vmem [#allocation5], %s274
        %s276 = smul.u32 2, %s27
        %p277 = scmp.lt.s32.totalorder %s26, 1
        %s278 = scalar_select %p277, %s26, 1
        %s279 = smul.addr %s278, 8
        %s280 = smul.addr %s279, 8
        %s281 = scalar_lea.vmem %s1, %s280
        %s282 = smul.u32 2, %s27
        %v284 = vld [vmem:[%s244] sm:$0xff]
        %v285 = vld [vmem:[%s244 + $0x8] sm:$0xff]
        %v286 = vld [vmem:[%s244 + $0x10] sm:$0xff]
        %v287 = vld [vmem:[%s244 + $0x18] sm:$0xff]
        %v288 = vld [vmem:[%s244 + $0x20] sm:$0xff]
        %v289 = vld [vmem:[%s244 + $0x28] sm:$0xff]
        %v290 = vld [vmem:[%s244 + $0x30] sm:$0xff]
        %v291 = vld [vmem:[%s244 + $0x38] sm:$0xff]
        %v292 = vld [vmem:[%s244 + $0x40] sm:$0xff]
        %v293 = vld [vmem:[%s244 + $0x48] sm:$0xff]
        %v294 = vld [vmem:[%s244 + $0x50] sm:$0xff]
        %v295 = vld [vmem:[%s244 + $0x58] sm:$0xff]
        %v296 = vld [vmem:[%s244 + $0x60] sm:$0xff]
        %v297 = vld [vmem:[%s244 + $0x68] sm:$0xff]
        %v298 = vld [vmem:[%s244 + $0x70] sm:$0xff]
        %v299 = vld [vmem:[%s244 + $0x78] sm:$0xff]
        %v300 = vpack.c.bf16 %v286, %v284
        %v301 = vpack.c.bf16 %v287, %v285
        %v302 = vpack.c.bf16 %v290, %v288
        %v303 = vpack.c.bf16 %v291, %v289
        %v304 = vpack.c.bf16 %v294, %v292
        %v305 = vpack.c.bf16 %v295, %v293
        %v306 = vpack.c.bf16 %v298, %v296
        %v307 = vpack.c.bf16 %v299, %v297
        %v308 = vld [vmem:[%s2] sm:$0xf]
        %v309 = vld [vmem:[%s2 + $0x4] sm:$0xf]
        %v310 = vld [vmem:[%s2 + $0x8] sm:$0xf]
        %v311 = vld [vmem:[%s2 + $0xc] sm:$0xf]
        %v312 = vld [vmem:[%s2 + $0x10] sm:$0xf]
        %v313 = vld [vmem:[%s2 + $0x14] sm:$0xf]
        %v314 = vld [vmem:[%s2 + $0x18] sm:$0xf]
        %v315 = vld [vmem:[%s2 + $0x1c] sm:$0xf]
        %v316 = vld [vmem:[%s281] sm:$0xff]
        %v317 = vld [vmem:[%s281 + $0x8] sm:$0xff]
        %v318 = vld [vmem:[%s281 + $0x10] sm:$0xff]
        %v319 = vld [vmem:[%s281 + $0x18] sm:$0xff]
        %v320 = vld [vmem:[%s281 + $0x20] sm:$0xff]
        %v321 = vld [vmem:[%s281 + $0x28] sm:$0xff]
        %v322 = vld [vmem:[%s281 + $0x30] sm:$0xff]
        %v323 = vld [vmem:[%s281 + $0x38] sm:$0xff]
        %325 = vset.pattern.permute.xlu0 0
        %326 = vperm.xlu0 %325, %v316
        %v327 = vpop.permute.xlu0 %326
        %330 = vset.pattern.permute.xlu0 0
        %331 = vperm.xlu0 %330, %v317
        %v332 = vpop.permute.xlu0 %331
        %335 = vset.pattern.permute.xlu0 0
        %336 = vperm.xlu0 %335, %v318
        %v337 = vpop.permute.xlu0 %336
        %340 = vset.pattern.permute.xlu0 0
        %341 = vperm.xlu0 %340, %v319
        %v342 = vpop.permute.xlu0 %341
        %345 = vset.pattern.permute.xlu0 0
        %346 = vperm.xlu0 %345, %v320
        %v347 = vpop.permute.xlu0 %346
        %350 = vset.pattern.permute.xlu0 0
        %351 = vperm.xlu0 %350, %v321
        %v352 = vpop.permute.xlu0 %351
        %355 = vset.pattern.permute.xlu0 0
        %356 = vperm.xlu0 %355, %v322
        %v357 = vpop.permute.xlu0 %356
        %360 = vset.pattern.permute.xlu0 0
        %361 = vperm.xlu0 %360, %v323
        %v362 = vpop.permute.xlu0 %361
        %v372 = vunpack.c.l.b16 %v308
        %v373 = vunpack.c.l.b16 %v309
        %v374 = vunpack.c.l.b16 %v310
        %v375 = vunpack.c.l.b16 %v311
        %v376 = vunpack.c.l.b16 %v312
        %v377 = vunpack.c.l.b16 %v313
        %v378 = vunpack.c.l.b16 %v314
        %v379 = vunpack.c.l.b16 %v315
        %v380 = vpack.c.b16 %v373, %v372
        %v381 = vpack.c.b16 %v375, %v374
        %v382 = vpack.c.b16 %v377, %v376
        %v383 = vpack.c.b16 %v379, %v378
        %vm384 = vcmask 523264
        %v386 = vsel %vm384, %v380, 0
        %v389 = vsel %vm384, %v381, 0
        %v392 = vsel %vm384, %v382, 0
        %v395 = vsel %vm384, %v383, 0
        %397 = vmatprep.subr.bf16.mxu0 %v301
        %398 = vmatpush1.bf16.msra.mxu0 %v300
        %399 = vmatprep.subr.bf16.mxu0 %v303
        %400 = vmatpush1.bf16.msra.mxu0 %v302
        %401 = vmatprep.subr.bf16.mxu0 %v305
        %402 = vmatpush1.bf16.msra.mxu0 %v304
        %403 = vmatprep.subr.bf16.mxu0 %v307
        %404 = vmatpush1.bf16.msra.mxu0 %v306
        %405 = vmatprep.subr.bf16.mxu0 0
        %406 = vmatpush1.bf16.msra.mxu0 0
        %407 = vmatprep.subr.bf16.mxu0 0
        %408 = vmatpush1.bf16.msra.mxu0 0
        %409 = vmatprep.subr.bf16.mxu0 0
        %410 = vmatpush1.bf16.msra.mxu0 0
        %411 = vmatprep.subr.bf16.mxu0 0
        %412 = vmatpush1.bf16.msra.mxu0 0
        %413 = vmatprep.subr.bf16.mxu0 0
        %414 = vmatpush1.bf16.msra.mxu0 0
        %415 = vmatprep.subr.bf16.mxu0 0
        %416 = vmatpush1.bf16.msra.mxu0 0
        %417 = vmatprep.subr.bf16.mxu0 0
        %418 = vmatpush1.bf16.msra.mxu0 0
        %419 = vmatprep.subr.bf16.mxu0 0
        %420 = vmatpush1.bf16.msra.mxu0 0
        %421 = vmatprep.subr.bf16.mxu0 0
        %422 = vmatpush1.bf16.msra.mxu0 0
        %423 = vmatprep.subr.bf16.mxu0 0
        %424 = vmatpush1.bf16.msra.mxu0 0
        %425 = vmatprep.subr.bf16.mxu0 0
        %426 = vmatpush1.bf16.msra.mxu0 0
        %427 = vmatprep.subr.bf16.mxu0 0
        %428 = vmatpush1.bf16.msra.mxu0 0
        %429 = vmatprep.mubr.bf16.mxu0 0
        %430 = vmatmul.mubr.bf16.gmra.mrb[0].mxu0 %v386
        %v431 = vpop.f32.mrb[0].mxu0
        %v432 = vadd.f32 %v327, %v431
        %v433 = vpop.f32.mrb[0].mxu0
        %v434 = vadd.f32 %v327, %v433
        %v435 = vpop.f32.mrb[0].mxu0
        %v436 = vadd.f32 %v332, %v435
        %v437 = vpop.f32.mrb[0].mxu0
        %v438 = vadd.f32 %v332, %v437
        %439 = vmatprep.mubr.bf16.mxu0 0
        %440 = vmatmul.mubr.bf16.gmra.mrb[0].mxu0 %v389
        %v441 = vpop.f32.mrb[0].mxu0
        %v442 = vadd.f32 %v337, %v441
        %v443 = vpop.f32.mrb[0].mxu0
        %v444 = vadd.f32 %v337, %v443
        %v445 = vpop.f32.mrb[0].mxu0
        %v446 = vadd.f32 %v342, %v445
        %v447 = vpop.f32.mrb[0].mxu0
        %v448 = vadd.f32 %v342, %v447
        %449 = vmatprep.mubr.bf16.mxu0 0
        %450 = vmatmul.mubr.bf16.gmra.mrb[0].mxu0 %v392
        %v451 = vpop.f32.mrb[0].mxu0
        %v452 = vadd.f32 %v347, %v451
        %v453 = vpop.f32.mrb[0].mxu0
        %v454 = vadd.f32 %v347, %v453
        %v455 = vpop.f32.mrb[0].mxu0
        %v456 = vadd.f32 %v352, %v455
        %v457 = vpop.f32.mrb[0].mxu0
        %v458 = vadd.f32 %v352, %v457
        %459 = vmatprep.mubr.bf16.mxu0 0
        %460 = vmatmul.mubr.bf16.gmra.mrb[0].mxu0 %v395
        %v461 = vpop.f32.mrb[0].mxu0
        %v462 = vadd.f32 %v357, %v461
        %v463 = vpop.f32.mrb[0].mxu0
        %v464 = vadd.f32 %v357, %v463
        %v465 = vpop.f32.mrb[0].mxu0
        %v466 = vadd.f32 %v362, %v465
        %v467 = vpop.f32.mrb[0].mxu0
        %v468 = vadd.f32 %v362, %v467
        %469 = vdwg.mxu0
        %v470 = vmax.f32 %v432, 0.0
        %v471 = vmax.f32 %v434, 0.0
        %v472 = vmax.f32 %v436, 0.0
        %v473 = vmax.f32 %v438, 0.0
        %v474 = vmax.f32 %v442, 0.0
        %v475 = vmax.f32 %v444, 0.0
        %v476 = vmax.f32 %v446, 0.0
        %v477 = vmax.f32 %v448, 0.0
        %v478 = vmax.f32 %v452, 0.0
        %v479 = vmax.f32 %v454, 0.0
        %v480 = vmax.f32 %v456, 0.0
        %v481 = vmax.f32 %v458, 0.0
        %v482 = vmax.f32 %v462, 0.0
        %v483 = vmax.f32 %v464, 0.0
        %v484 = vmax.f32 %v466, 0.0
        %v485 = vmax.f32 %v468, 0.0
        %v486 = vld [vmem:[%s3] sm:$0xf]
        %v487 = vld [vmem:[%s3 + $0x4] sm:$0xf]
        %v488 = vld [vmem:[%s3 + $0x8] sm:$0xf]
        %v489 = vld [vmem:[%s3 + $0xc] sm:$0xf]
        %v490 = vld [vmem:[%s3 + $0x10] sm:$0xf]
        %v491 = vld [vmem:[%s3 + $0x14] sm:$0xf]
        %v492 = vld [vmem:[%s3 + $0x18] sm:$0xf]
        %v493 = vld [vmem:[%s3 + $0x1c] sm:$0xf]
        %v494 = vpack.c.bf16 %v472, %v470
        %v495 = vpack.c.bf16 %v473, %v471
        %v496 = vpack.c.bf16 %v476, %v474
        %v497 = vpack.c.bf16 %v477, %v475
        %v498 = vpack.c.bf16 %v480, %v478
        %v499 = vpack.c.bf16 %v481, %v479
        %v500 = vpack.c.bf16 %v484, %v482
        %v501 = vpack.c.bf16 %v485, %v483
        %v502 = vld [vmem:[%s4] sm:$0xff]
        %v503 = vld [vmem:[%s4 + $0x8] sm:$0xff]
        %v504 = vld [vmem:[%s4 + $0x10] sm:$0xff]
        %v505 = vld [vmem:[%s4 + $0x18] sm:$0xff]
        %v506 = vld [vmem:[%s4 + $0x20] sm:$0xff]
        %v507 = vld [vmem:[%s4 + $0x28] sm:$0xff]
        %v508 = vld [vmem:[%s4 + $0x30] sm:$0xff]
        %v509 = vld [vmem:[%s4 + $0x38] sm:$0xff]
        %511 = vset.pattern.permute.xlu0 0
        %512 = vperm.xlu0 %511, %v502
        %v513 = vpop.permute.xlu0 %512
        %516 = vset.pattern.permute.xlu0 0
        %517 = vperm.xlu0 %516, %v503
        %v518 = vpop.permute.xlu0 %517
        %521 = vset.pattern.permute.xlu0 0
        %522 = vperm.xlu0 %521, %v504
        %v523 = vpop.permute.xlu0 %522
        %526 = vset.pattern.permute.xlu0 0
        %527 = vperm.xlu0 %526, %v505
        %v528 = vpop.permute.xlu0 %527
        %531 = vset.pattern.permute.xlu0 0
        %532 = vperm.xlu0 %531, %v506
        %v533 = vpop.permute.xlu0 %532
        %536 = vset.pattern.permute.xlu0 0
        %537 = vperm.xlu0 %536, %v507
        %v538 = vpop.permute.xlu0 %537
        %541 = vset.pattern.permute.xlu0 0
        %542 = vperm.xlu0 %541, %v508
        %v543 = vpop.permute.xlu0 %542
        %546 = vset.pattern.permute.xlu0 0
        %547 = vperm.xlu0 %546, %v509
        %v548 = vpop.permute.xlu0 %547
        %v558 = vunpack.c.l.b16 %v486
        %v559 = vunpack.c.l.b16 %v487
        %v560 = vunpack.c.l.b16 %v488
        %v561 = vunpack.c.l.b16 %v489
        %v562 = vunpack.c.l.b16 %v490
        %v563 = vunpack.c.l.b16 %v491
        %v564 = vunpack.c.l.b16 %v492
        %v565 = vunpack.c.l.b16 %v493
        %v566 = vpack.c.b16 %v559, %v558
        %v567 = vpack.c.b16 %v561, %v560
        %v568 = vpack.c.b16 %v563, %v562
        %v569 = vpack.c.b16 %v565, %v564
        %v571 = vsel %vm384, %v566, 0
        %v574 = vsel %vm384, %v567, 0
        %v577 = vsel %vm384, %v568, 0
        %v580 = vsel %vm384, %v569, 0
        %582 = vmatprep.subr.bf16.mxu0 %v495
        %583 = vmatpush1.bf16.msra.mxu0 %v494
        %584 = vmatprep.subr.bf16.mxu0 %v497
        %585 = vmatpush1.bf16.msra.mxu0 %v496
        %586 = vmatprep.subr.bf16.mxu0 %v499
        %587 = vmatpush1.bf16.msra.mxu0 %v498
        %588 = vmatprep.subr.bf16.mxu0 %v501
        %589 = vmatpush1.bf16.msra.mxu0 %v500
        %590 = vmatprep.subr.bf16.mxu0 0
        %591 = vmatpush1.bf16.msra.mxu0 0
        %592 = vmatprep.subr.bf16.mxu0 0
        %593 = vmatpush1.bf16.msra.mxu0 0
        %594 = vmatprep.subr.bf16.mxu0 0
        %595 = vmatpush1.bf16.msra.mxu0 0
        %596 = vmatprep.subr.bf16.mxu0 0
        %597 = vmatpush1.bf16.msra.mxu0 0
        %598 = vmatprep.subr.bf16.mxu0 0
        %599 = vmatpush1.bf16.msra.mxu0 0
        %600 = vmatprep.subr.bf16.mxu0 0
        %601 = vmatpush1.bf16.msra.mxu0 0
        %602 = vmatprep.subr.bf16.mxu0 0
        %603 = vmatpush1.bf16.msra.mxu0 0
        %604 = vmatprep.subr.bf16.mxu0 0
        %605 = vmatpush1.bf16.msra.mxu0 0
        %606 = vmatprep.subr.bf16.mxu0 0
        %607 = vmatpush1.bf16.msra.mxu0 0
        %608 = vmatprep.subr.bf16.mxu0 0
        %609 = vmatpush1.bf16.msra.mxu0 0
        %610 = vmatprep.subr.bf16.mxu0 0
        %611 = vmatpush1.bf16.msra.mxu0 0
        %612 = vmatprep.subr.bf16.mxu0 0
        %613 = vmatpush1.bf16.msra.mxu0 0
        %614 = vmatprep.mubr.bf16.mxu0 0
        %615 = vmatmul.mubr.bf16.gmra.mrb[0].mxu0 %v571
        %v616 = vpop.f32.mrb[0].mxu0
        %v617 = vadd.f32 %v513, %v616
        %v618 = vpop.f32.mrb[0].mxu0
        %v619 = vadd.f32 %v513, %v618
        %v620 = vpop.f32.mrb[0].mxu0
        %v621 = vadd.f32 %v518, %v620
        %v622 = vpop.f32.mrb[0].mxu0
        %v623 = vadd.f32 %v518, %v622
        %624 = vmatprep.mubr.bf16.mxu0 0
        %625 = vmatmul.mubr.bf16.gmra.mrb[0].mxu0 %v574
        %v626 = vpop.f32.mrb[0].mxu0
        %v627 = vadd.f32 %v523, %v626
        %v628 = vpop.f32.mrb[0].mxu0
        %v629 = vadd.f32 %v523, %v628
        %v630 = vpop.f32.mrb[0].mxu0
        %v631 = vadd.f32 %v528, %v630
        %v632 = vpop.f32.mrb[0].mxu0
        %v633 = vadd.f32 %v528, %v632
        %634 = vmatprep.mubr.bf16.mxu0 0
        %635 = vmatmul.mubr.bf16.gmra.mrb[0].mxu0 %v577
        %v636 = vpop.f32.mrb[0].mxu0
        %v637 = vadd.f32 %v533, %v636
        %v638 = vpop.f32.mrb[0].mxu0
        %v639 = vadd.f32 %v533, %v638
        %v640 = vpop.f32.mrb[0].mxu0
        %v641 = vadd.f32 %v538, %v640
        %v642 = vpop.f32.mrb[0].mxu0
        %v643 = vadd.f32 %v538, %v642
        %644 = vmatprep.mubr.bf16.mxu0 0
        %645 = vmatmul.mubr.bf16.gmra.mrb[0].mxu0 %v580
        %v646 = vpop.f32.mrb[0].mxu0
        %v647 = vadd.f32 %v543, %v646
        %v648 = vpop.f32.mrb[0].mxu0
        %v649 = vadd.f32 %v543, %v648
        %v650 = vpop.f32.mrb[0].mxu0
        %v651 = vadd.f32 %v548, %v650
        %v652 = vpop.f32.mrb[0].mxu0
        %v653 = vadd.f32 %v548, %v652
        %654 = vdwg.mxu0
        %v655 = vmax.f32 %v617, 0.0
        %v656 = vmax.f32 %v619, 0.0
        %v657 = vmax.f32 %v621, 0.0
        %v658 = vmax.f32 %v623, 0.0
        %v659 = vmax.f32 %v627, 0.0
        %v660 = vmax.f32 %v629, 0.0
        %v661 = vmax.f32 %v631, 0.0
        %v662 = vmax.f32 %v633, 0.0
        %v663 = vmax.f32 %v637, 0.0
        %v664 = vmax.f32 %v639, 0.0
        %v665 = vmax.f32 %v641, 0.0
        %v666 = vmax.f32 %v643, 0.0
        %v667 = vmax.f32 %v647, 0.0
        %v668 = vmax.f32 %v649, 0.0
        %v669 = vmax.f32 %v651, 0.0
        %v670 = vmax.f32 %v653, 0.0
        %v671 = vpack.c.bf16 %v657, %v655
        %v672 = vpack.c.bf16 %v658, %v656
        %v673 = vpack.c.bf16 %v661, %v659
        %v674 = vpack.c.bf16 %v662, %v660
        %v675 = vpack.c.bf16 %v665, %v663
        %v676 = vpack.c.bf16 %v666, %v664
        %v677 = vpack.c.bf16 %v669, %v667
        %v678 = vpack.c.bf16 %v670, %v668
        %v687 = vunpack.c.l.b16 %v671
        %v688 = vunpack.c.l.b16 %v672
        %v689 = vunpack.c.h.b16 %v671
        %v690 = vunpack.c.h.b16 %v672
        %v691 = vunpack.c.l.b16 %v673
        %v692 = vunpack.c.l.b16 %v674
        %v693 = vunpack.c.h.b16 %v673
        %v694 = vunpack.c.h.b16 %v674
        %v695 = vunpack.c.l.b16 %v675
        %v696 = vunpack.c.l.b16 %v676
        %v697 = vunpack.c.h.b16 %v675
        %v698 = vunpack.c.h.b16 %v676
        %v699 = vunpack.c.l.b16 %v677
        %v700 = vunpack.c.l.b16 %v678
        %v701 = vunpack.c.h.b16 %v677
        %v702 = vunpack.c.h.b16 %v678
        %v703 = vpack.c.b16 %v688, %v687
        %v704 = vpack.c.b16 %v690, %v689
        %v705 = vpack.c.b16 %v692, %v691
        %v706 = vpack.c.b16 %v694, %v693
        %v707 = vpack.c.b16 %v696, %v695
        %v708 = vpack.c.b16 %v698, %v697
        %v709 = vpack.c.b16 %v700, %v699
        %v710 = vpack.c.b16 %v702, %v701
        %719 = vst [vmem:[%s275] sm:$0xff] %v703
        %720 = vst [vmem:[%s275 + $0x8] sm:$0xff] %v704
        %721 = vst [vmem:[%s275 + $0x10] sm:$0xff] %v705
        %722 = vst [vmem:[%s275 + $0x18] sm:$0xff] %v706
        %723 = vst [vmem:[%s275 + $0x20] sm:$0xff] %v707
        %724 = vst [vmem:[%s275 + $0x28] sm:$0xff] %v708
        %725 = vst [vmem:[%s275 + $0x30] sm:$0xff] %v709
        %726 = vst [vmem:[%s275 + $0x38] sm:$0xff] %v710
        %s727 = sand.u32 %s161, 1
        %s728 = scalar_lea.sflag [#allocation4], %s727
        %s729 = sand.u32 %s161, 1
        %s730 = smul.addr %s729, 64
        %s731 = scalar_lea.vmem [#allocation5], %s730
        // Predicated region
        $region45: #{tpu_custom_call.1} parent=39 // pred_check
          %p732 = pneg %p171
        $region46: #{tpu_custom_call.1} parent=39 // pred_check_branch
          %734 = sbr.rel (%p732) target = $region48
        $region47: #{tpu_custom_call.1} parent=39 // pred_region
          %s735 = smul.u32 2, %s27
          %s737 = ssub.s32 1024, 1024
          %738 = vsyncadd %s728, %s737
          %s739 = smul.addr %s26, 16
          %s740 = sadd.s32 %s735, %s739
          %s741 = smul.addr %s740, 64
          %s742 = scalar_lea.hbm %s5, %s741
          %s743 = sshll.u32 %s731, 4
          %s744 = int_to_ptr.vmem [resolvable:$true] %s743
          %749 = dma.vmem_to_hbm [thread:$0]  %s744, 1024, %s742, %s728, 128, 128, 8
        $region48: #{tpu_custom_call.1} parent=39 // pred_fallthru
          _
      $region40: #{tpu_custom_call.1} parent=5 // pred_fallthru
        _
      %p750 = scmp.le.s32.totalorder 2, %s17
      // Predicated region
      $region49: #{tpu_custom_call.1} parent=5 // pred_check
        %p751 = pneg %p750
      $region50: #{tpu_custom_call.1} parent=5 // pred_check_branch
        %753 = sbr.rel (%p751) target = $region52
      $region51: #{tpu_custom_call.1} parent=5 // pred_region
        %s754 = ssub.s32 %s17, 2
        // Predicated region
        $region53: #{tpu_custom_call.1} parent=51 // pred_check
          %p755 = pneg %p177
        $region54: #{tpu_custom_call.1} parent=51 // pred_check_branch
          %757 = sbr.rel (%p755) target = $region56
        $region55: #{tpu_custom_call.1} parent=51 // pred_region
          %s758 = sand.u32 %s162, 1
          %s759 = scalar_lea.sflag [#allocation4], %s758
          %s760 = sand.u32 %s162, 1
          %s761 = smul.addr %s760, 64
          %s762 = scalar_lea.vmem [#allocation5], %s761
          %763 = dma.done %s759, 1024
        $region56: #{tpu_custom_call.1} parent=51 // pred_fallthru
          _
      $region52: #{tpu_custom_call.1} parent=5 // pred_fallthru
        _
    $region6: #{tpu_custom_call.1} parent=1 // loop_footer
      %s21 = sadd.s32 1, %s17
    $region7: #{tpu_custom_call.1} parent=1 // loop_footer_branch
      %16 = sbr.rel target = $region3
    $region8: #{tpu_custom_call.1} parent=1 // loop_exit
      _
    %764 = vsyncpa [#allocation3], 1
    %s765 = scalar_lea.sflag [#allocation3], 1
    %766 = vsyncpa %s765, 1
    %767 = vsyncpa [#allocation4], 1
    %s768 = scalar_lea.sflag [#allocation4], 1
    %769 = vsyncpa %s768, 1

</llo_original>
